<compile_context>
chip_gen: v7x
topology: tpu7x:2x2x1
jax: 0.10.0
libtpu: 0.0.40
codegen_flags: <defaults>
</compile_context>

<pallas_src>
import jax
import jax.numpy as jnp
from jax.experimental import pallas as pl
from jax.experimental.pallas import tpu as pltpu

HIDDEN_DIM = 128
INPUT_CHANNELS = 23
WINDOW_SIZE_SAMPLES = 64   # small, consistent with the module's window_size arg
NUM_CLASSES = 2

LANE = 128                 # TPU lane width
SUBLANE_BF16 = 16          # bf16 sublane packing granularity
TB_MAX = 1024              # batch tile cap (sized for v7x 32 MiB scoped VMEM)


def _round_up(n, m):
    return ((n + m - 1) // m) * m


def seizure_kernel(x_ref, w1_ref, b1_ref, w2_ref, b2_ref, w3_ref, b3_ref, o_ref):
    # ----- encoder: Linear(C*T -> H) + ReLU (bf16 MXU matmul, f32 accumulate) -----
    h = jnp.dot(x_ref[...], w1_ref[...], preferred_element_type=jnp.float32)
    h = jnp.maximum(h + b1_ref[...], 0.0)

    # ----- stgnn: single-node graph (adjacency == I_1), Linear(H -> H) + ReLU,
    #              mean over the node dimension is the identity for 1 node -----
    g = jnp.dot(h.astype(jnp.bfloat16), w2_ref[...],
                preferred_element_type=jnp.float32)
    g = jnp.maximum(g + b2_ref[...], 0.0)

    # ----- explainer: Linear(H -> NUM_CLASSES), N zero-padded to 128 lanes so
    #       the output store is lane-dense (no masked vst.msk); wrapper slices -----
    logits = jnp.dot(g.astype(jnp.bfloat16), w3_ref[...],
                     preferred_element_type=jnp.float32)
    o_ref[...] = (logits + b3_ref[...]).astype(o_ref.dtype)


def seizure_model(x, params):
    """x: (B, C, T) float32 NCW.  Returns logits (B, NUM_CLASSES) float32."""
    B, C, T = x.shape
    K = C * T
    w1, b1, w2, b2, w3, b3 = params
    H = w1.shape[1]

    # ---- one-time layout prep outside the kernel (padding + bf16 cast) ----
    K_pad = _round_up(K, LANE)                      # 1472 -> 1536
    N_pad = _round_up(NUM_CLASSES, LANE)            # 2    -> 128
    TB = min(TB_MAX, _round_up(B, SUBLANE_BF16))    # batch tile, multiple of 16
    B_pad = _round_up(B, TB)

    x_flat = x.reshape(B, K)                        # == torch.flatten(x, 1)
    x_p = jnp.zeros((B_pad, K_pad), jnp.bfloat16).at[:B, :K].set(
        x_flat.astype(jnp.bfloat16))

    w1_p = jnp.zeros((K_pad, H), jnp.bfloat16).at[:K, :].set(w1.astype(jnp.bfloat16))
    w2_p = w2.astype(jnp.bfloat16)
    w3_p = jnp.zeros((H, N_pad), jnp.bfloat16).at[:, :NUM_CLASSES].set(
        w3.astype(jnp.bfloat16))
    b1_p = b1.astype(jnp.float32)
    b2_p = b2.astype(jnp.float32)
    b3_p = jnp.zeros((1, N_pad), jnp.float32).at[:, :NUM_CLASSES].set(b3)

    grid = (B_pad // TB,)
    resident = lambda shape: pl.BlockSpec(shape, lambda i: (0, 0))  # weights stay in VMEM

    flops = 2 * B_pad * (K_pad * H + H * H + H * N_pad)
    bytes_accessed = (x_p.size * 2
                      + (w1_p.size + w2_p.size + w3_p.size) * 2
                      + (b1_p.size + b2_p.size + b3_p.size) * 4
                      + B_pad * N_pad * 4)

    out = pl.pallas_call(
        seizure_kernel,
        out_shape=jax.ShapeDtypeStruct((B_pad, N_pad), jnp.float32),
        grid=grid,
        in_specs=[
            pl.BlockSpec((TB, K_pad), lambda i: (i, 0)),   # x: tiled over batch
            resident(w1_p.shape), resident(b1_p.shape),
            resident(w2_p.shape), resident(b2_p.shape),
            resident(w3_p.shape), resident(b3_p.shape),
        ],
        out_specs=pl.BlockSpec((TB, N_pad), lambda i: (i, 0)),
        compiler_params=pltpu.CompilerParams(
            dimension_semantics=("parallel",)),
        cost_estimate=pl.CostEstimate(
            flops=flops, transcendentals=0, bytes_accessed=bytes_accessed),
    )(x_p, w1_p, b1_p, w2_p, b2_p, w3_p, b3_p)

    return out[:B, :NUM_CLASSES]


def init_params(key):
    """Deterministic synthetic parameters (logical shapes implied by the module)."""
    kin = INPUT_CHANNELS * WINDOW_SIZE_SAMPLES
    k1, k2, k3 = jax.random.split(key, 3)
    w1 = jax.random.normal(k1, (kin, HIDDEN_DIM), jnp.float32) * (1.0 / jnp.sqrt(kin))
    b1 = jnp.zeros((1, HIDDEN_DIM), jnp.float32)
    w2 = jax.random.normal(k2, (HIDDEN_DIM, HIDDEN_DIM), jnp.float32) * (1.0 / jnp.sqrt(HIDDEN_DIM))
    b2 = jnp.zeros((1, HIDDEN_DIM), jnp.float32)
    w3 = jax.random.normal(k3, (HIDDEN_DIM, NUM_CLASSES), jnp.float32) * (1.0 / jnp.sqrt(HIDDEN_DIM))
    b3 = jnp.zeros((1, NUM_CLASSES), jnp.float32)
    return (w1, b1, w2, b2, w3, b3)


def seizure_model_ref_f32(x, params):
    """Pure-JAX f32 reference (model semantics)."""
    B = x.shape[0]
    w1, b1, w2, b2, w3, b3 = params
    h = jnp.maximum(x.reshape(B, -1) @ w1 + b1, 0.0)
    g = jnp.maximum(h @ w2 + b2, 0.0)
    return g @ w3 + b3


def seizure_model_ref_bf16(x, params):
    """Pure-JAX reference at matched (bf16-in / f32-accumulate) precision."""
    B = x.shape[0]
    w1, b1, w2, b2, w3, b3 = params
    xb = x.reshape(B, -1).astype(jnp.bfloat16)
    h = jnp.maximum(
        jnp.dot(xb, w1.astype(jnp.bfloat16), preferred_element_type=jnp.float32) + b1, 0.0)
    g = jnp.maximum(
        jnp.dot(h.astype(jnp.bfloat16), w2.astype(jnp.bfloat16),
                preferred_element_type=jnp.float32) + b2, 0.0)
    return jnp.dot(g.astype(jnp.bfloat16), w3.astype(jnp.bfloat16),
                   preferred_element_type=jnp.float32) + b3


if __name__ == "__main__":
    key = jax.random.PRNGKey(0)
    kx, kp = jax.random.split(key)
    B = 2
    x = jax.random.normal(kx, (B, INPUT_CHANNELS, WINDOW_SIZE_SAMPLES), jnp.float32)
    params = init_params(kp)

    logits = seizure_model(x, params)
    jax.block_until_ready(logits)

    assert logits.shape == (B, NUM_CLASSES)
    ref_matched = seizure_model_ref_bf16(x, params)
    ref_f32 = seizure_model_ref_f32(x, params)
    assert jnp.allclose(logits, ref_matched, atol=5e-3, rtol=5e-3)
    assert jnp.allclose(logits, ref_f32, atol=5e-2, rtol=5e-2)

    print("KERNEL_OK")
</pallas_src>

<mosaic_0001>
module attributes {stable_mosaic.version = 11 : i64} {
  func.func @seizure_kernel(%arg0: i32, %arg1: memref<16x1536xbf16, #tpu.memory_space<vmem>>, %arg2: memref<1536x128xbf16, #tpu.memory_space<vmem>>, %arg3: memref<1x128xf32, #tpu.memory_space<vmem>>, %arg4: memref<128x128xbf16, #tpu.memory_space<vmem>>, %arg5: memref<1x128xf32, #tpu.memory_space<vmem>>, %arg6: memref<128x128xbf16, #tpu.memory_space<vmem>>, %arg7: memref<1x128xf32, #tpu.memory_space<vmem>>, %arg8: memref<16x128xf32, #tpu.memory_space<vmem>>) attributes {dimension_semantics = [#tpu.dimension_semantics<parallel>], iteration_bounds = array<i64: 1>, scalar_prefetch = 0 : i64, scratch_operands = 0 : i64, tpu.core_type = #tpu.core_type<tc>, window_params = [{transform_indices = @transform_0, window_bounds = array<i64: 16, 1536>}, {pipeline_mode = #tpu.pipeline_mode<synchronous>, transform_indices = @transform_1, window_bounds = array<i64: 1536, 128>}, {pipeline_mode = #tpu.pipeline_mode<synchronous>, transform_indices = @transform_2, window_bounds = array<i64: 1, 128>}, {pipeline_mode = #tpu.pipeline_mode<synchronous>, transform_indices = @transform_3, window_bounds = array<i64: 128, 128>}, {pipeline_mode = #tpu.pipeline_mode<synchronous>, transform_indices = @transform_4, window_bounds = array<i64: 1, 128>}, {pipeline_mode = #tpu.pipeline_mode<synchronous>, transform_indices = @transform_5, window_bounds = array<i64: 128, 128>}, {pipeline_mode = #tpu.pipeline_mode<synchronous>, transform_indices = @transform_6, window_bounds = array<i64: 1, 128>}, {transform_indices = @transform_7, window_bounds = array<i64: 16, 128>}]} {
    %c0 = arith.constant 0 : index
    %c0_0 = arith.constant 0 : index
    %0 = vector.load %arg1[%c0, %c0_0] : memref<16x1536xbf16, #tpu.memory_space<vmem>>, vector<16x1536xbf16>
    %c0_1 = arith.constant 0 : index
    %c0_2 = arith.constant 0 : index
    %1 = vector.load %arg2[%c0_1, %c0_2] : memref<1536x128xbf16, #tpu.memory_space<vmem>>, vector<1536x128xbf16>
    %cst = arith.constant dense<0.000000e+00> : vector<16x128xf32>
    %2 = tpu.matmul %0, %1, %cst {dimension_numbers = #tpu.dot_dimension_numbers<[1], [0], [0], [1], [0, 0, 1, 1], [], []>} : vector<16x1536xbf16>, vector<1536x128xbf16>, vector<16x128xf32> -> vector<16x128xf32>
    %c0_3 = arith.constant 0 : index
    %c0_4 = arith.constant 0 : index
    %3 = vector.load %arg3[%c0_3, %c0_4] : memref<1x128xf32, #tpu.memory_space<vmem>>, vector<1x128xf32>
    %4 = vector.broadcast %3 : vector<1x128xf32> to vector<16x128xf32>
    %5 = arith.addf %2, %4 : vector<16x128xf32>
    %cst_5 = arith.constant 0.000000e+00 : f32
    %6 = vector.broadcast %cst_5 : f32 to vector<16x128xf32>
    %7 = arith.maximumf %5, %6 : vector<16x128xf32>
    %8 = arith.truncf %7 : vector<16x128xf32> to vector<16x128xbf16>
    %c0_6 = arith.constant 0 : index
    %c0_7 = arith.constant 0 : index
    %9 = vector.load %arg4[%c0_6, %c0_7] : memref<128x128xbf16, #tpu.memory_space<vmem>>, vector<128x128xbf16>
    %cst_8 = arith.constant dense<0.000000e+00> : vector<16x128xf32>
    %10 = tpu.matmul %8, %9, %cst_8 {dimension_numbers = #tpu.dot_dimension_numbers<[1], [0], [0], [1], [0, 0, 1, 1], [], []>} : vector<16x128xbf16>, vector<128x128xbf16>, vector<16x128xf32> -> vector<16x128xf32>
    %c0_9 = arith.constant 0 : index
    %c0_10 = arith.constant 0 : index
    %11 = vector.load %arg5[%c0_9, %c0_10] : memref<1x128xf32, #tpu.memory_space<vmem>>, vector<1x128xf32>
    %12 = vector.broadcast %11 : vector<1x128xf32> to vector<16x128xf32>
    %13 = arith.addf %10, %12 : vector<16x128xf32>
    %cst_11 = arith.constant 0.000000e+00 : f32
    %14 = vector.broadcast %cst_11 : f32 to vector<16x128xf32>
    %15 = arith.maximumf %13, %14 : vector<16x128xf32>
    %16 = arith.truncf %15 : vector<16x128xf32> to vector<16x128xbf16>
    %c0_12 = arith.constant 0 : index
    %c0_13 = arith.constant 0 : index
    %17 = vector.load %arg6[%c0_12, %c0_13] : memref<128x128xbf16, #tpu.memory_space<vmem>>, vector<128x128xbf16>
    %cst_14 = arith.constant dense<0.000000e+00> : vector<16x128xf32>
    %18 = tpu.matmul %16, %17, %cst_14 {dimension_numbers = #tpu.dot_dimension_numbers<[1], [0], [0], [1], [0, 0, 1, 1], [], []>} : vector<16x128xbf16>, vector<128x128xbf16>, vector<16x128xf32> -> vector<16x128xf32>
    %c0_15 = arith.constant 0 : index
    %c0_16 = arith.constant 0 : index
    %19 = vector.load %arg7[%c0_15, %c0_16] : memref<1x128xf32, #tpu.memory_space<vmem>>, vector<1x128xf32>
    %20 = vector.broadcast %19 : vector<1x128xf32> to vector<16x128xf32>
    %21 = arith.addf %18, %20 : vector<16x128xf32>
    %c0_17 = arith.constant 0 : index
    %c0_18 = arith.constant 0 : index
    %22 = vector.load %arg8[%c0_17, %c0_18] : memref<16x128xf32, #tpu.memory_space<vmem>>, vector<16x128xf32>
    tpu.vector_store %arg8[%c0_17, %c0_18], %21 {strides = array<i32>} : memref<16x128xf32, #tpu.memory_space<vmem>>, vector<16x128xf32>,
    return
  }
  func.func @transform_0(%arg0: i32) -> (i32, i32) {
    %c0_i32 = arith.constant 0 : i32
    %c0_i32_0 = arith.constant 0 : i32
    return %arg0, %c0_i32 : i32, i32
  }
  func.func @transform_1(%arg0: i32) -> (i32, i32) {
    %c0_i32 = arith.constant 0 : i32
    %c0_i32_0 = arith.constant 0 : i32
    %c0_i32_1 = arith.constant 0 : i32
    return %c0_i32, %c0_i32_0 : i32, i32
  }
  func.func @transform_2(%arg0: i32) -> (i32, i32) {
    %c0_i32 = arith.constant 0 : i32
    %c0_i32_0 = arith.constant 0 : i32
    %c0_i32_1 = arith.constant 0 : i32
    return %c0_i32, %c0_i32_0 : i32, i32
  }
  func.func @transform_3(%arg0: i32) -> (i32, i32) {
    %c0_i32 = arith.constant 0 : i32
    %c0_i32_0 = arith.constant 0 : i32
    %c0_i32_1 = arith.constant 0 : i32
    return %c0_i32, %c0_i32_0 : i32, i32
  }
  func.func @transform_4(%arg0: i32) -> (i32, i32) {
    %c0_i32 = arith.constant 0 : i32
    %c0_i32_0 = arith.constant 0 : i32
    %c0_i32_1 = arith.constant 0 : i32
    return %c0_i32, %c0_i32_0 : i32, i32
  }
  func.func @transform_5(%arg0: i32) -> (i32, i32) {
    %c0_i32 = arith.constant 0 : i32
    %c0_i32_0 = arith.constant 0 : i32
    %c0_i32_1 = arith.constant 0 : i32
    return %c0_i32, %c0_i32_0 : i32, i32
  }
  func.func @transform_6(%arg0: i32) -> (i32, i32) {
    %c0_i32 = arith.constant 0 : i32
    %c0_i32_0 = arith.constant 0 : i32
    %c0_i32_1 = arith.constant 0 : i32
    return %c0_i32, %c0_i32_0 : i32, i32
  }
  func.func @transform_7(%arg0: i32) -> (i32, i32) {
    %c0_i32 = arith.constant 0 : i32
    %c0_i32_0 = arith.constant 0 : i32
    return %arg0, %c0_i32 : i32, i32
  }
}

</mosaic_0001>

<llo_original>
// kernel: tpu_custom_call.1
$region0: #{tpu_custom_call.1}
  #allocation0 [shape = 'u32[]', space=smem, size = 0x4, offset = 0x4, fixed_abs, tag = 'smem constant byte address 0x4 - core index']
  #allocation1 [shape = 'u32[144,128]{1,0:T(1,128)}', space=vmem, size = 0x12000, scoped, tag = 'internal scratch']
  %s0 = inlined_call_operand.hbm [shape: bf16[16,1536], index: 0, kind: input, shape index: {}]
  %s1 = inlined_call_operand.hbm [shape: bf16[1536,128], index: 1, kind: input, shape index: {}]
  %s2 = inlined_call_operand.vmem [shape: f32[1,128], index: 2, kind: input, shape index: {}]
  %s3 = inlined_call_operand.hbm [shape: bf16[128,128], index: 3, kind: input, shape index: {}]
  %s4 = inlined_call_operand.vmem [shape: f32[1,128], index: 4, kind: input, shape index: {}]
  %s5 = inlined_call_operand.hbm [shape: bf16[128,128], index: 5, kind: input, shape index: {}]
  %s6 = inlined_call_operand.vmem [shape: f32[1,128], index: 6, kind: input, shape index: {}]
  %s7 = inlined_call_operand.hbm [shape: f32[16,128], index: 7, kind: output, shape index: {}]
  %s8 = sld [smem:[#allocation0]]
  $region54: #{tpu_custom_call.1} parent=0
    _
  %s10 = ssub.s32 1, %s8
  %s11 = scalar_select 0, %s10, %s8
  $region1: #{tpu_custom_call.1} parent=0
    #allocation2 [shape = 'u8[49152]{0}', space=vmem, size = 0xc000, scoped, tag = 'input window, operand 0, single buffered']
    #allocation3 [shape = 's32[1]{0}', space=sflag, size = 0x4, scoped, tag = 'scoped memory for tpu_custom_call.1']
    #allocation4 [shape = 's32[1]{0}', space=sflag, size = 0x4, scoped, tag = 'scoped memory for tpu_custom_call.1']
    #allocation5 [shape = 'u8[393216]{0}', space=vmem, size = 0x60000, scoped, tag = 'input window, operand 1, single buffered']
    #allocation6 [shape = 's32[1]{0}', space=sflag, size = 0x4, scoped, tag = 'scoped memory for tpu_custom_call.1']
    #allocation7 [shape = 'u8[32768]{0}', space=vmem, size = 0x8000, scoped, tag = 'input window, operand 3, single buffered']
    #allocation8 [shape = 'u8[32768]{0}', space=vmem, size = 0x8000, scoped, tag = 'input window, operand 5, single buffered']
    #allocation9 [shape = 's32[1]{0}', space=sflag, size = 0x4, scoped, tag = 'scoped memory for tpu_custom_call.1']
    #allocation10 [shape = 'u8[8192]{0}', space=vmem, size = 0x2000, scoped, tag = 'output window, operand 0, single buffered']
    %12 = vsyncpa [#allocation3], 0
    %13 = vsyncpa [#allocation6], 0
    %14 = vsyncpa [#allocation9], 0
    %15 = vsyncpa [#allocation4], 0
    // Predicated region
    $region2: #{tpu_custom_call.1} parent=1 // pred_check
      _
    $region3: #{tpu_custom_call.1} parent=1 // pred_check_branch
      %17 = sbr.rel (0) target = $region5
    $region4: #{tpu_custom_call.1} parent=1 // pred_region
      %s19 = ssub.s32 1536, 1536
      %20 = vsyncadd [#allocation3], %s19
      %s21 = sshll.u32 [#allocation2], 4
      %s22 = int_to_ptr.vmem [resolvable:$true] %s21
      %27 = dma.hbm_to_vmem [thread:$0]  %s0, 1536, %s22, [#allocation3], 768, 768, 48
    $region5: #{tpu_custom_call.1} parent=1 // pred_fallthru
      _
    // Predicated region
    $region6: #{tpu_custom_call.1} parent=1 // pred_check
      _
    $region7: #{tpu_custom_call.1} parent=1 // pred_check_branch
      %29 = sbr.rel (0) target = $region9
    $region8: #{tpu_custom_call.1} parent=1 // pred_region
      %s31 = ssub.s32 12288, 12288
      %32 = vsyncadd [#allocation6], %s31
      %s33 = sshll.u32 [#allocation5], 4
      %s34 = int_to_ptr.vmem [resolvable:$true] %s33
      %39 = dma.hbm_to_vmem [thread:$0]  %s1, 12288, %s34, [#allocation6], 64, 64, 4
    $region9: #{tpu_custom_call.1} parent=1 // pred_fallthru
      _
    // Predicated region
    $region10: #{tpu_custom_call.1} parent=1 // pred_check
      _
    $region11: #{tpu_custom_call.1} parent=1 // pred_check_branch
      %41 = sbr.rel (0) target = $region13
    $region12: #{tpu_custom_call.1} parent=1 // pred_region
      _
    $region13: #{tpu_custom_call.1} parent=1 // pred_fallthru
      _
    // Predicated region
    $region14: #{tpu_custom_call.1} parent=1 // pred_check
      _
    $region15: #{tpu_custom_call.1} parent=1 // pred_check_branch
      %43 = sbr.rel (0) target = $region17
    $region16: #{tpu_custom_call.1} parent=1 // pred_region
      %s45 = ssub.s32 1024, 1024
      %46 = vsyncadd [#allocation6], %s45
      %s47 = sshll.u32 [#allocation7], 4
      %s48 = int_to_ptr.vmem [resolvable:$true] %s47
      %53 = dma.hbm_to_vmem [thread:$0]  %s3, 1024, %s48, [#allocation6], 64, 64, 4
    $region17: #{tpu_custom_call.1} parent=1 // pred_fallthru
      _
    // Predicated region
    $region18: #{tpu_custom_call.1} parent=1 // pred_check
      _
    $region19: #{tpu_custom_call.1} parent=1 // pred_check_branch
      %55 = sbr.rel (0) target = $region21
    $region20: #{tpu_custom_call.1} parent=1 // pred_region
      _
    $region21: #{tpu_custom_call.1} parent=1 // pred_fallthru
      _
    // Predicated region
    $region22: #{tpu_custom_call.1} parent=1 // pred_check
      _
    $region23: #{tpu_custom_call.1} parent=1 // pred_check_branch
      %57 = sbr.rel (0) target = $region25
    $region24: #{tpu_custom_call.1} parent=1 // pred_region
      %s59 = ssub.s32 1024, 1024
      %60 = vsyncadd [#allocation9], %s59
      %s61 = sshll.u32 [#allocation8], 4
      %s62 = int_to_ptr.vmem [resolvable:$true] %s61
      %67 = dma.hbm_to_vmem [thread:$0]  %s5, 1024, %s62, [#allocation9], 64, 64, 4
    $region25: #{tpu_custom_call.1} parent=1 // pred_fallthru
      _
    // Predicated region
    $region26: #{tpu_custom_call.1} parent=1 // pred_check
      _
    $region27: #{tpu_custom_call.1} parent=1 // pred_check_branch
      %69 = sbr.rel (0) target = $region29
    $region28: #{tpu_custom_call.1} parent=1 // pred_region
      _
    $region29: #{tpu_custom_call.1} parent=1 // pred_fallthru
      _
    // Predicated region
    $region30: #{tpu_custom_call.1} parent=1 // pred_check
      _
    $region31: #{tpu_custom_call.1} parent=1 // pred_check_branch
      %71 = sbr.rel (0) target = $region33
    $region32: #{tpu_custom_call.1} parent=1 // pred_region
      %72 = dma.done [#allocation3], 1536
    $region33: #{tpu_custom_call.1} parent=1 // pred_fallthru
      _
    // Predicated region
    $region34: #{tpu_custom_call.1} parent=1 // pred_check
      _
    $region35: #{tpu_custom_call.1} parent=1 // pred_check_branch
      %74 = sbr.rel (0) target = $region37
    $region36: #{tpu_custom_call.1} parent=1 // pred_region
      %75 = dma.done [#allocation6], 12288
    $region37: #{tpu_custom_call.1} parent=1 // pred_fallthru
      _
    // Predicated region
    $region38: #{tpu_custom_call.1} parent=1 // pred_check
      _
    $region39: #{tpu_custom_call.1} parent=1 // pred_check_branch
      %77 = sbr.rel (0) target = $region41
    $region40: #{tpu_custom_call.1} parent=1 // pred_region
      %78 = dma.done [#allocation6], 1024
    $region41: #{tpu_custom_call.1} parent=1 // pred_fallthru
      _
    // Predicated region
    $region42: #{tpu_custom_call.1} parent=1 // pred_check
      _
    $region43: #{tpu_custom_call.1} parent=1 // pred_check_branch
      %80 = sbr.rel (0) target = $region45
    $region44: #{tpu_custom_call.1} parent=1 // pred_region
      %81 = dma.done [#allocation9], 1024
    $region45: #{tpu_custom_call.1} parent=1 // pred_fallthru
      _
    %v83 = vld [vmem:[#allocation2] sm:$0xff]
    %v84 = vld [vmem:[#allocation2 + $0x8] sm:$0xff]
    %v85 = vld [vmem:[#allocation2 + $0x10] sm:$0xff]
    %v86 = vld [vmem:[#allocation2 + $0x18] sm:$0xff]
    %v87 = vld [vmem:[#allocation2 + $0x20] sm:$0xff]
    %v88 = vld [vmem:[#allocation2 + $0x28] sm:$0xff]
    %v89 = vld [vmem:[#allocation2 + $0x30] sm:$0xff]
    %v90 = vld [vmem:[#allocation2 + $0x38] sm:$0xff]
    %v91 = vld [vmem:[#allocation2 + $0x40] sm:$0xff]
    %v92 = vld [vmem:[#allocation2 + $0x48] sm:$0xff]
    %v93 = vld [vmem:[#allocation2 + $0x50] sm:$0xff]
    %v94 = vld [vmem:[#allocation2 + $0x58] sm:$0xff]
    %v95 = vld [vmem:[#allocation5] sm:$0xf]
    %v96 = vld [vmem:[#allocation5 + $0x4] sm:$0xf]
    %v97 = vld [vmem:[#allocation5 + $0x8] sm:$0xf]
    %v98 = vld [vmem:[#allocation5 + $0xc] sm:$0xf]
    %v99 = vld [vmem:[#allocation5 + $0x10] sm:$0xf]
    %v100 = vld [vmem:[#allocation5 + $0x14] sm:$0xf]
    %v101 = vld [vmem:[#allocation5 + $0x18] sm:$0xf]
    %v102 = vld [vmem:[#allocation5 + $0x1c] sm:$0xf]
    %v103 = vld [vmem:[#allocation5 + $0x20] sm:$0xf]
    %v104 = vld [vmem:[#allocation5 + $0x24] sm:$0xf]
    %v105 = vld [vmem:[#allocation5 + $0x28] sm:$0xf]
    %v106 = vld [vmem:[#allocation5 + $0x2c] sm:$0xf]
    %v107 = vld [vmem:[#allocation5 + $0x30] sm:$0xf]
    %v108 = vld [vmem:[#allocation5 + $0x34] sm:$0xf]
    %v109 = vld [vmem:[#allocation5 + $0x38] sm:$0xf]
    %v110 = vld [vmem:[#allocation5 + $0x3c] sm:$0xf]
    %v111 = vld [vmem:[#allocation5 + $0x40] sm:$0xf]
    %v112 = vld [vmem:[#allocation5 + $0x44] sm:$0xf]
    %v113 = vld [vmem:[#allocation5 + $0x48] sm:$0xf]
    %v114 = vld [vmem:[#allocation5 + $0x4c] sm:$0xf]
    %v115 = vld [vmem:[#allocation5 + $0x50] sm:$0xf]
    %v116 = vld [vmem:[#allocation5 + $0x54] sm:$0xf]
    %v117 = vld [vmem:[#allocation5 + $0x58] sm:$0xf]
    %v118 = vld [vmem:[#allocation5 + $0x5c] sm:$0xf]
    %v119 = vld [vmem:[#allocation5 + $0x60] sm:$0xf]
    %v120 = vld [vmem:[#allocation5 + $0x64] sm:$0xf]
    %v121 = vld [vmem:[#allocation5 + $0x68] sm:$0xf]
    %v122 = vld [vmem:[#allocation5 + $0x6c] sm:$0xf]
    %v123 = vld [vmem:[#allocation5 + $0x70] sm:$0xf]
    %v124 = vld [vmem:[#allocation5 + $0x74] sm:$0xf]
    %v125 = vld [vmem:[#allocation5 + $0x78] sm:$0xf]
    %v126 = vld [vmem:[#allocation5 + $0x7c] sm:$0xf]
    %v127 = vld [vmem:[#allocation5 + $0x80] sm:$0xf]
    %v128 = vld [vmem:[#allocation5 + $0x84] sm:$0xf]
    %v129 = vld [vmem:[#allocation5 + $0x88] sm:$0xf]
    %v130 = vld [vmem:[#allocation5 + $0x8c] sm:$0xf]
    %v131 = vld [vmem:[#allocation5 + $0x90] sm:$0xf]
    %v132 = vld [vmem:[#allocation5 + $0x94] sm:$0xf]
    %v133 = vld [vmem:[#allocation5 + $0x98] sm:$0xf]
    %v134 = vld [vmem:[#allocation5 + $0x9c] sm:$0xf]
    %v135 = vld [vmem:[#allocation5 + $0xa0] sm:$0xf]
    %v136 = vld [vmem:[#allocation5 + $0xa4] sm:$0xf]
    %v137 = vld [vmem:[#allocation5 + $0xa8] sm:$0xf]
    %v138 = vld [vmem:[#allocation5 + $0xac] sm:$0xf]
    %v139 = vld [vmem:[#allocation5 + $0xb0] sm:$0xf]
    %v140 = vld [vmem:[#allocation5 + $0xb4] sm:$0xf]
    %v141 = vld [vmem:[#allocation5 + $0xb8] sm:$0xf]
    %v142 = vld [vmem:[#allocation5 + $0xbc] sm:$0xf]
    %v143 = vld [vmem:[#allocation5 + $0xc0] sm:$0xf]
    %v144 = vld [vmem:[#allocation5 + $0xc4] sm:$0xf]
    %v145 = vld [vmem:[#allocation5 + $0xc8] sm:$0xf]
    %v146 = vld [vmem:[#allocation5 + $0xcc] sm:$0xf]
    %v147 = vld [vmem:[#allocation5 + $0xd0] sm:$0xf]
    %v148 = vld [vmem:[#allocation5 + $0xd4] sm:$0xf]
    %v149 = vld [vmem:[#allocation5 + $0xd8] sm:$0xf]
    %v150 = vld [vmem:[#allocation5 + $0xdc] sm:$0xf]
    %v151 = vld [vmem:[#allocation5 + $0xe0] sm:$0xf]
    %v152 = vld [vmem:[#allocation5 + $0xe4] sm:$0xf]
    %v153 = vld [vmem:[#allocation5 + $0xe8] sm:$0xf]
    %v154 = vld [vmem:[#allocation5 + $0xec] sm:$0xf]
    %v155 = vld [vmem:[#allocation5 + $0xf0] sm:$0xf]
    %v156 = vld [vmem:[#allocation5 + $0xf4] sm:$0xf]
    %v157 = vld [vmem:[#allocation5 + $0xf8] sm:$0xf]
    %v158 = vld [vmem:[#allocation5 + $0xfc] sm:$0xf]
    %v159 = vld [vmem:[#allocation5 + $0x100] sm:$0xf]
    %v160 = vld [vmem:[#allocation5 + $0x104] sm:$0xf]
    %v161 = vld [vmem:[#allocation5 + $0x108] sm:$0xf]
    %v162 = vld [vmem:[#allocation5 + $0x10c] sm:$0xf]
    %v163 = vld [vmem:[#allocation5 + $0x110] sm:$0xf]
    %v164 = vld [vmem:[#allocation5 + $0x114] sm:$0xf]
    %v165 = vld [vmem:[#allocation5 + $0x118] sm:$0xf]
    %v166 = vld [vmem:[#allocation5 + $0x11c] sm:$0xf]
    %v167 = vld [vmem:[#allocation5 + $0x120] sm:$0xf]
    %v168 = vld [vmem:[#allocation5 + $0x124] sm:$0xf]
    %v169 = vld [vmem:[#allocation5 + $0x128] sm:$0xf]
    %v170 = vld [vmem:[#allocation5 + $0x12c] sm:$0xf]
    %v171 = vld [vmem:[#allocation5 + $0x130] sm:$0xf]
    %v172 = vld [vmem:[#allocation5 + $0x134] sm:$0xf]
    %v173 = vld [vmem:[#allocation5 + $0x138] sm:$0xf]
    %v174 = vld [vmem:[#allocation5 + $0x13c] sm:$0xf]
    %v175 = vld [vmem:[#allocation5 + $0x140] sm:$0xf]
    %v176 = vld [vmem:[#allocation5 + $0x144] sm:$0xf]
    %v177 = vld [vmem:[#allocation5 + $0x148] sm:$0xf]
    %v178 = vld [vmem:[#allocation5 + $0x14c] sm:$0xf]
    %v179 = vld [vmem:[#allocation5 + $0x150] sm:$0xf]
    %v180 = vld [vmem:[#allocation5 + $0x154] sm:$0xf]
    %v181 = vld [vmem:[#allocation5 + $0x158] sm:$0xf]
    %v182 = vld [vmem:[#allocation5 + $0x15c] sm:$0xf]
    %v183 = vld [vmem:[#allocation5 + $0x160] sm:$0xf]
    %v184 = vld [vmem:[#allocation5 + $0x164] sm:$0xf]
    %v185 = vld [vmem:[#allocation5 + $0x168] sm:$0xf]
    %v186 = vld [vmem:[#allocation5 + $0x16c] sm:$0xf]
    %v187 = vld [vmem:[#allocation5 + $0x170] sm:$0xf]
    %v188 = vld [vmem:[#allocation5 + $0x174] sm:$0xf]
    %v189 = vld [vmem:[#allocation5 + $0x178] sm:$0xf]
    %v190 = vld [vmem:[#allocation5 + $0x17c] sm:$0xf]
    %v191 = vld [vmem:[#allocation5 + $0x180] sm:$0xf]
    %v192 = vld [vmem:[#allocation5 + $0x184] sm:$0xf]
    %v193 = vld [vmem:[#allocation5 + $0x188] sm:$0xf]
    %v194 = vld [vmem:[#allocation5 + $0x18c] sm:$0xf]
    %v195 = vld [vmem:[#allocation5 + $0x190] sm:$0xf]
    %v196 = vld [vmem:[#allocation5 + $0x194] sm:$0xf]
    %v197 = vld [vmem:[#allocation5 + $0x198] sm:$0xf]
    %v198 = vld [vmem:[#allocation5 + $0x19c] sm:$0xf]
    %v199 = vld [vmem:[#allocation5 + $0x1a0] sm:$0xf]
    %v200 = vld [vmem:[#allocation5 + $0x1a4] sm:$0xf]
    %v201 = vld [vmem:[#allocation5 + $0x1a8] sm:$0xf]
    %v202 = vld [vmem:[#allocation5 + $0x1ac] sm:$0xf]
    %v203 = vld [vmem:[#allocation5 + $0x1b0] sm:$0xf]
    %v204 = vld [vmem:[#allocation5 + $0x1b4] sm:$0xf]
    %v205 = vld [vmem:[#allocation5 + $0x1b8] sm:$0xf]
    %v206 = vld [vmem:[#allocation5 + $0x1bc] sm:$0xf]
    %v207 = vld [vmem:[#allocation5 + $0x1c0] sm:$0xf]
    %v208 = vld [vmem:[#allocation5 + $0x1c4] sm:$0xf]
    %v209 = vld [vmem:[#allocation5 + $0x1c8] sm:$0xf]
    %v210 = vld [vmem:[#allocation5 + $0x1cc] sm:$0xf]
    %v211 = vld [vmem:[#allocation5 + $0x1d0] sm:$0xf]
    %v212 = vld [vmem:[#allocation5 + $0x1d4] sm:$0xf]
    %v213 = vld [vmem:[#allocation5 + $0x1d8] sm:$0xf]
    %v214 = vld [vmem:[#allocation5 + $0x1dc] sm:$0xf]
    %v215 = vld [vmem:[#allocation5 + $0x1e0] sm:$0xf]
    %v216 = vld [vmem:[#allocation5 + $0x1e4] sm:$0xf]
    %v217 = vld [vmem:[#allocation5 + $0x1e8] sm:$0xf]
    %v218 = vld [vmem:[#allocation5 + $0x1ec] sm:$0xf]
    %v219 = vld [vmem:[#allocation5 + $0x1f0] sm:$0xf]
    %v220 = vld [vmem:[#allocation5 + $0x1f4] sm:$0xf]
    %v221 = vld [vmem:[#allocation5 + $0x1f8] sm:$0xf]
    %v222 = vld [vmem:[#allocation5 + $0x1fc] sm:$0xf]
    %v223 = vld [vmem:[#allocation5 + $0x200] sm:$0xf]
    %v224 = vld [vmem:[#allocation5 + $0x204] sm:$0xf]
    %v225 = vld [vmem:[#allocation5 + $0x208] sm:$0xf]
    %v226 = vld [vmem:[#allocation5 + $0x20c] sm:$0xf]
    %v227 = vld [vmem:[#allocation5 + $0x210] sm:$0xf]
    %v228 = vld [vmem:[#allocation5 + $0x214] sm:$0xf]
    %v229 = vld [vmem:[#allocation5 + $0x218] sm:$0xf]
    %v230 = vld [vmem:[#allocation5 + $0x21c] sm:$0xf]
    %v231 = vld [vmem:[#allocation5 + $0x220] sm:$0xf]
    %v232 = vld [vmem:[#allocation5 + $0x224] sm:$0xf]
    %v233 = vld [vmem:[#allocation5 + $0x228] sm:$0xf]
    %v234 = vld [vmem:[#allocation5 + $0x22c] sm:$0xf]
    %v235 = vld [vmem:[#allocation5 + $0x230] sm:$0xf]
    %v236 = vld [vmem:[#allocation5 + $0x234] sm:$0xf]
    %v237 = vld [vmem:[#allocation5 + $0x238] sm:$0xf]
    %v238 = vld [vmem:[#allocation5 + $0x23c] sm:$0xf]
    %v239 = vld [vmem:[#allocation5 + $0x240] sm:$0xf]
    %v240 = vld [vmem:[#allocation5 + $0x244] sm:$0xf]
    %v241 = vld [vmem:[#allocation5 + $0x248] sm:$0xf]
    %v242 = vld [vmem:[#allocation5 + $0x24c] sm:$0xf]
    %v243 = vld [vmem:[#allocation5 + $0x250] sm:$0xf]
    %v244 = vld [vmem:[#allocation5 + $0x254] sm:$0xf]
    %v245 = vld [vmem:[#allocation5 + $0x258] sm:$0xf]
    %v246 = vld [vmem:[#allocation5 + $0x25c] sm:$0xf]
    %v247 = vld [vmem:[#allocation5 + $0x260] sm:$0xf]
    %v248 = vld [vmem:[#allocation5 + $0x264] sm:$0xf]
    %v249 = vld [vmem:[#allocation5 + $0x268] sm:$0xf]
    %v250 = vld [vmem:[#allocation5 + $0x26c] sm:$0xf]
    %v251 = vld [vmem:[#allocation5 + $0x270] sm:$0xf]
    %v252 = vld [vmem:[#allocation5 + $0x274] sm:$0xf]
    %v253 = vld [vmem:[#allocation5 + $0x278] sm:$0xf]
    %v254 = vld [vmem:[#allocation5 + $0x27c] sm:$0xf]
    %v255 = vld [vmem:[#allocation5 + $0x280] sm:$0xf]
    %v256 = vld [vmem:[#allocation5 + $0x284] sm:$0xf]
    %v257 = vld [vmem:[#allocation5 + $0x288] sm:$0xf]
    %v258 = vld [vmem:[#allocation5 + $0x28c] sm:$0xf]
    %v259 = vld [vmem:[#allocation5 + $0x290] sm:$0xf]
    %v260 = vld [vmem:[#allocation5 + $0x294] sm:$0xf]
    %v261 = vld [vmem:[#allocation5 + $0x298] sm:$0xf]
    %v262 = vld [vmem:[#allocation5 + $0x29c] sm:$0xf]
    %v263 = vld [vmem:[#allocation5 + $0x2a0] sm:$0xf]
    %v264 = vld [vmem:[#allocation5 + $0x2a4] sm:$0xf]
    %v265 = vld [vmem:[#allocation5 + $0x2a8] sm:$0xf]
    %v266 = vld [vmem:[#allocation5 + $0x2ac] sm:$0xf]
    %v267 = vld [vmem:[#allocation5 + $0x2b0] sm:$0xf]
    %v268 = vld [vmem:[#allocation5 + $0x2b4] sm:$0xf]
    %v269 = vld [vmem:[#allocation5 + $0x2b8] sm:$0xf]
    %v270 = vld [vmem:[#allocation5 + $0x2bc] sm:$0xf]
    %v271 = vld [vmem:[#allocation5 + $0x2c0] sm:$0xf]
    %v272 = vld [vmem:[#allocation5 + $0x2c4] sm:$0xf]
    %v273 = vld [vmem:[#allocation5 + $0x2c8] sm:$0xf]
    %v274 = vld [vmem:[#allocation5 + $0x2cc] sm:$0xf]
    %v275 = vld [vmem:[#allocation5 + $0x2d0] sm:$0xf]
    %v276 = vld [vmem:[#allocation5 + $0x2d4] sm:$0xf]
    %v277 = vld [vmem:[#allocation5 + $0x2d8] sm:$0xf]
    %v278 = vld [vmem:[#allocation5 + $0x2dc] sm:$0xf]
    %v279 = vld [vmem:[#allocation5 + $0x2e0] sm:$0xf]
    %v280 = vld [vmem:[#allocation5 + $0x2e4] sm:$0xf]
    %v281 = vld [vmem:[#allocation5 + $0x2e8] sm:$0xf]
    %v282 = vld [vmem:[#allocation5 + $0x2ec] sm:$0xf]
    %v283 = vld [vmem:[#allocation5 + $0x2f0] sm:$0xf]
    %v284 = vld [vmem:[#allocation5 + $0x2f4] sm:$0xf]
    %v285 = vld [vmem:[#allocation5 + $0x2f8] sm:$0xf]
    %v286 = vld [vmem:[#allocation5 + $0x2fc] sm:$0xf]
    %v287 = vld [vmem:[%s2] sm:$0x1]
    %v289 = vlaneseq
    %v290 = vshrl.u32 %v289, 7
    %v291 = vsub.s32 0, %v290
    %v292 = vrot.slane %v287, %v291
    %v306 = vunpack.c.l.b16 %v83
    %v307 = vunpack.c.h.b16 %v83
    %v308 = vunpack.c.l.b16 %v84
    %v309 = vunpack.c.h.b16 %v84
    %v310 = vunpack.c.l.b16 %v85
    %v311 = vunpack.c.h.b16 %v85
    %v312 = vunpack.c.l.b16 %v86
    %v313 = vunpack.c.h.b16 %v86
    %v314 = vunpack.c.l.b16 %v87
    %v315 = vunpack.c.h.b16 %v87
    %v316 = vunpack.c.l.b16 %v88
    %v317 = vunpack.c.h.b16 %v88
    %v318 = vunpack.c.l.b16 %v89
    %v319 = vunpack.c.h.b16 %v89
    %v320 = vunpack.c.l.b16 %v90
    %v321 = vunpack.c.h.b16 %v90
    %v322 = vunpack.c.l.b16 %v91
    %v323 = vunpack.c.h.b16 %v91
    %v324 = vunpack.c.l.b16 %v92
    %v325 = vunpack.c.h.b16 %v92
    %v326 = vunpack.c.l.b16 %v93
    %v327 = vunpack.c.h.b16 %v93
    %v328 = vunpack.c.l.b16 %v94
    %v329 = vunpack.c.h.b16 %v94
    %v330 = vpack.c.b16 %v318, %v306
    %v331 = vpack.c.b16 %v319, %v307
    %v332 = vpack.c.b16 %v320, %v308
    %v333 = vpack.c.b16 %v321, %v309
    %v334 = vpack.c.b16 %v322, %v310
    %v335 = vpack.c.b16 %v323, %v311
    %v336 = vpack.c.b16 %v324, %v312
    %v337 = vpack.c.b16 %v325, %v313
    %v338 = vpack.c.b16 %v326, %v314
    %v339 = vpack.c.b16 %v327, %v315
    %v340 = vpack.c.b16 %v328, %v316
    %v341 = vpack.c.b16 %v329, %v317
    %v546 = vunpack.c.l.b16 %v95
    %v547 = vunpack.c.l.b16 %v96
    %v548 = vunpack.c.l.b16 %v97
    %v549 = vunpack.c.l.b16 %v98
    %v550 = vunpack.c.l.b16 %v99
    %v551 = vunpack.c.l.b16 %v100
    %v552 = vunpack.c.l.b16 %v101
    %v553 = vunpack.c.l.b16 %v102
    %v554 = vunpack.c.l.b16 %v103
    %v555 = vunpack.c.l.b16 %v104
    %v556 = vunpack.c.l.b16 %v105
    %v557 = vunpack.c.l.b16 %v106
    %v558 = vunpack.c.l.b16 %v107
    %v559 = vunpack.c.l.b16 %v108
    %v560 = vunpack.c.l.b16 %v109
    %v561 = vunpack.c.l.b16 %v110
    %v562 = vunpack.c.l.b16 %v111
    %v563 = vunpack.c.l.b16 %v112
    %v564 = vunpack.c.l.b16 %v113
    %v565 = vunpack.c.l.b16 %v114
    %v566 = vunpack.c.l.b16 %v115
    %v567 = vunpack.c.l.b16 %v116
    %v568 = vunpack.c.l.b16 %v117
    %v569 = vunpack.c.l.b16 %v118
    %v570 = vunpack.c.l.b16 %v119
    %v571 = vunpack.c.l.b16 %v120
    %v572 = vunpack.c.l.b16 %v121
    %v573 = vunpack.c.l.b16 %v122
    %v574 = vunpack.c.l.b16 %v123
    %v575 = vunpack.c.l.b16 %v124
    %v576 = vunpack.c.l.b16 %v125
    %v577 = vunpack.c.l.b16 %v126
    %v578 = vunpack.c.l.b16 %v127
    %v579 = vunpack.c.l.b16 %v128
    %v580 = vunpack.c.l.b16 %v129
    %v581 = vunpack.c.l.b16 %v130
    %v582 = vunpack.c.l.b16 %v131
    %v583 = vunpack.c.l.b16 %v132
    %v584 = vunpack.c.l.b16 %v133
    %v585 = vunpack.c.l.b16 %v134
    %v586 = vunpack.c.l.b16 %v135
    %v587 = vunpack.c.l.b16 %v136
    %v588 = vunpack.c.l.b16 %v137
    %v589 = vunpack.c.l.b16 %v138
    %v590 = vunpack.c.l.b16 %v139
    %v591 = vunpack.c.l.b16 %v140
    %v592 = vunpack.c.l.b16 %v141
    %v593 = vunpack.c.l.b16 %v142
    %v594 = vunpack.c.l.b16 %v143
    %v595 = vunpack.c.l.b16 %v144
    %v596 = vunpack.c.l.b16 %v145
    %v597 = vunpack.c.l.b16 %v146
    %v598 = vunpack.c.l.b16 %v147
    %v599 = vunpack.c.l.b16 %v148
    %v600 = vunpack.c.l.b16 %v149
    %v601 = vunpack.c.l.b16 %v150
    %v602 = vunpack.c.l.b16 %v151
    %v603 = vunpack.c.l.b16 %v152
    %v604 = vunpack.c.l.b16 %v153
    %v605 = vunpack.c.l.b16 %v154
    %v606 = vunpack.c.l.b16 %v155
    %v607 = vunpack.c.l.b16 %v156
    %v608 = vunpack.c.l.b16 %v157
    %v609 = vunpack.c.l.b16 %v158
    %v610 = vunpack.c.l.b16 %v159
    %v611 = vunpack.c.l.b16 %v160
    %v612 = vunpack.c.l.b16 %v161
    %v613 = vunpack.c.l.b16 %v162
    %v614 = vunpack.c.l.b16 %v163
    %v615 = vunpack.c.l.b16 %v164
    %v616 = vunpack.c.l.b16 %v165
    %v617 = vunpack.c.l.b16 %v166
    %v618 = vunpack.c.l.b16 %v167
    %v619 = vunpack.c.l.b16 %v168
    %v620 = vunpack.c.l.b16 %v169
    %v621 = vunpack.c.l.b16 %v170
    %v622 = vunpack.c.l.b16 %v171
    %v623 = vunpack.c.l.b16 %v172
    %v624 = vunpack.c.l.b16 %v173
    %v625 = vunpack.c.l.b16 %v174
    %v626 = vunpack.c.l.b16 %v175
    %v627 = vunpack.c.l.b16 %v176
    %v628 = vunpack.c.l.b16 %v177
    %v629 = vunpack.c.l.b16 %v178
    %v630 = vunpack.c.l.b16 %v179
    %v631 = vunpack.c.l.b16 %v180
    %v632 = vunpack.c.l.b16 %v181
    %v633 = vunpack.c.l.b16 %v182
    %v634 = vunpack.c.l.b16 %v183
    %v635 = vunpack.c.l.b16 %v184
    %v636 = vunpack.c.l.b16 %v185
    %v637 = vunpack.c.l.b16 %v186
    %v638 = vunpack.c.l.b16 %v187
    %v639 = vunpack.c.l.b16 %v188
    %v640 = vunpack.c.l.b16 %v189
    %v641 = vunpack.c.l.b16 %v190
    %v642 = vunpack.c.l.b16 %v191
    %v643 = vunpack.c.l.b16 %v192
    %v644 = vunpack.c.l.b16 %v193
    %v645 = vunpack.c.l.b16 %v194
    %v646 = vunpack.c.l.b16 %v195
    %v647 = vunpack.c.l.b16 %v196
    %v648 = vunpack.c.l.b16 %v197
    %v649 = vunpack.c.l.b16 %v198
    %v650 = vunpack.c.l.b16 %v199
    %v651 = vunpack.c.l.b16 %v200
    %v652 = vunpack.c.l.b16 %v201
    %v653 = vunpack.c.l.b16 %v202
    %v654 = vunpack.c.l.b16 %v203
    %v655 = vunpack.c.l.b16 %v204
    %v656 = vunpack.c.l.b16 %v205
    %v657 = vunpack.c.l.b16 %v206
    %v658 = vunpack.c.l.b16 %v207
    %v659 = vunpack.c.l.b16 %v208
    %v660 = vunpack.c.l.b16 %v209
    %v661 = vunpack.c.l.b16 %v210
    %v662 = vunpack.c.l.b16 %v211
    %v663 = vunpack.c.l.b16 %v212
    %v664 = vunpack.c.l.b16 %v213
    %v665 = vunpack.c.l.b16 %v214
    %v666 = vunpack.c.l.b16 %v215
    %v667 = vunpack.c.l.b16 %v216
    %v668 = vunpack.c.l.b16 %v217
    %v669 = vunpack.c.l.b16 %v218
    %v670 = vunpack.c.l.b16 %v219
    %v671 = vunpack.c.l.b16 %v220
    %v672 = vunpack.c.l.b16 %v221
    %v673 = vunpack.c.l.b16 %v222
    %v674 = vunpack.c.l.b16 %v223
    %v675 = vunpack.c.l.b16 %v224
    %v676 = vunpack.c.l.b16 %v225
    %v677 = vunpack.c.l.b16 %v226
    %v678 = vunpack.c.l.b16 %v227
    %v679 = vunpack.c.l.b16 %v228
    %v680 = vunpack.c.l.b16 %v229
    %v681 = vunpack.c.l.b16 %v230
    %v682 = vunpack.c.l.b16 %v231
    %v683 = vunpack.c.l.b16 %v232
    %v684 = vunpack.c.l.b16 %v233
    %v685 = vunpack.c.l.b16 %v234
    %v686 = vunpack.c.l.b16 %v235
    %v687 = vunpack.c.l.b16 %v236
    %v688 = vunpack.c.l.b16 %v237
    %v689 = vunpack.c.l.b16 %v238
    %v690 = vunpack.c.l.b16 %v239
    %v691 = vunpack.c.l.b16 %v240
    %v692 = vunpack.c.l.b16 %v241
    %v693 = vunpack.c.l.b16 %v242
    %v694 = vunpack.c.l.b16 %v243
    %v695 = vunpack.c.l.b16 %v244
    %v696 = vunpack.c.l.b16 %v245
    %v697 = vunpack.c.l.b16 %v246
    %v698 = vunpack.c.l.b16 %v247
    %v699 = vunpack.c.l.b16 %v248
    %v700 = vunpack.c.l.b16 %v249
    %v701 = vunpack.c.l.b16 %v250
    %v702 = vunpack.c.l.b16 %v251
    %v703 = vunpack.c.l.b16 %v252
    %v704 = vunpack.c.l.b16 %v253
    %v705 = vunpack.c.l.b16 %v254
    %v706 = vunpack.c.l.b16 %v255
    %v707 = vunpack.c.l.b16 %v256
    %v708 = vunpack.c.l.b16 %v257
    %v709 = vunpack.c.l.b16 %v258
    %v710 = vunpack.c.l.b16 %v259
    %v711 = vunpack.c.l.b16 %v260
    %v712 = vunpack.c.l.b16 %v261
    %v713 = vunpack.c.l.b16 %v262
    %v714 = vunpack.c.l.b16 %v263
    %v715 = vunpack.c.l.b16 %v264
    %v716 = vunpack.c.l.b16 %v265
    %v717 = vunpack.c.l.b16 %v266
    %v718 = vunpack.c.l.b16 %v267
    %v719 = vunpack.c.l.b16 %v268
    %v720 = vunpack.c.l.b16 %v269
    %v721 = vunpack.c.l.b16 %v270
    %v722 = vunpack.c.l.b16 %v271
    %v723 = vunpack.c.l.b16 %v272
    %v724 = vunpack.c.l.b16 %v273
    %v725 = vunpack.c.l.b16 %v274
    %v726 = vunpack.c.l.b16 %v275
    %v727 = vunpack.c.l.b16 %v276
    %v728 = vunpack.c.l.b16 %v277
    %v729 = vunpack.c.l.b16 %v278
    %v730 = vunpack.c.l.b16 %v279
    %v731 = vunpack.c.l.b16 %v280
    %v732 = vunpack.c.l.b16 %v281
    %v733 = vunpack.c.l.b16 %v282
    %v734 = vunpack.c.l.b16 %v283
    %v735 = vunpack.c.l.b16 %v284
    %v736 = vunpack.c.l.b16 %v285
    %v737 = vunpack.c.l.b16 %v286
    %v738 = vpack.c.b16 %v547, %v546
    %v739 = vpack.c.b16 %v549, %v548
    %v740 = vpack.c.b16 %v551, %v550
    %v741 = vpack.c.b16 %v553, %v552
    %v742 = vpack.c.b16 %v555, %v554
    %v743 = vpack.c.b16 %v557, %v556
    %v744 = vpack.c.b16 %v559, %v558
    %v745 = vpack.c.b16 %v561, %v560
    %v746 = vpack.c.b16 %v563, %v562
    %v747 = vpack.c.b16 %v565, %v564
    %v748 = vpack.c.b16 %v567, %v566
    %v749 = vpack.c.b16 %v569, %v568
    %v750 = vpack.c.b16 %v571, %v570
    %v751 = vpack.c.b16 %v573, %v572
    %v752 = vpack.c.b16 %v575, %v574
    %v753 = vpack.c.b16 %v577, %v576
    %v754 = vpack.c.b16 %v579, %v578
    %v755 = vpack.c.b16 %v581, %v580
    %v756 = vpack.c.b16 %v583, %v582
    %v757 = vpack.c.b16 %v585, %v584
    %v758 = vpack.c.b16 %v587, %v586
    %v759 = vpack.c.b16 %v589, %v588
    %v760 = vpack.c.b16 %v591, %v590
    %v761 = vpack.c.b16 %v593, %v592
    %v762 = vpack.c.b16 %v595, %v594
    %v763 = vpack.c.b16 %v597, %v596
    %v764 = vpack.c.b16 %v599, %v598
    %v765 = vpack.c.b16 %v601, %v600
    %v766 = vpack.c.b16 %v603, %v602
    %v767 = vpack.c.b16 %v605, %v604
    %v768 = vpack.c.b16 %v607, %v606
    %v769 = vpack.c.b16 %v609, %v608
    %v770 = vpack.c.b16 %v611, %v610
    %v771 = vpack.c.b16 %v613, %v612
    %v772 = vpack.c.b16 %v615, %v614
    %v773 = vpack.c.b16 %v617, %v616
    %v774 = vpack.c.b16 %v619, %v618
    %v775 = vpack.c.b16 %v621, %v620
    %v776 = vpack.c.b16 %v623, %v622
    %v777 = vpack.c.b16 %v625, %v624
    %v778 = vpack.c.b16 %v627, %v626
    %v779 = vpack.c.b16 %v629, %v628
    %v780 = vpack.c.b16 %v631, %v630
    %v781 = vpack.c.b16 %v633, %v632
    %v782 = vpack.c.b16 %v635, %v634
    %v783 = vpack.c.b16 %v637, %v636
    %v784 = vpack.c.b16 %v639, %v638
    %v785 = vpack.c.b16 %v641, %v640
    %v786 = vpack.c.b16 %v643, %v642
    %v787 = vpack.c.b16 %v645, %v644
    %v788 = vpack.c.b16 %v647, %v646
    %v789 = vpack.c.b16 %v649, %v648
    %v790 = vpack.c.b16 %v651, %v650
    %v791 = vpack.c.b16 %v653, %v652
    %v792 = vpack.c.b16 %v655, %v654
    %v793 = vpack.c.b16 %v657, %v656
    %v794 = vpack.c.b16 %v659, %v658
    %v795 = vpack.c.b16 %v661, %v660
    %v796 = vpack.c.b16 %v663, %v662
    %v797 = vpack.c.b16 %v665, %v664
    %v798 = vpack.c.b16 %v667, %v666
    %v799 = vpack.c.b16 %v669, %v668
    %v800 = vpack.c.b16 %v671, %v670
    %v801 = vpack.c.b16 %v673, %v672
    %v802 = vpack.c.b16 %v675, %v674
    %v803 = vpack.c.b16 %v677, %v676
    %v804 = vpack.c.b16 %v679, %v678
    %v805 = vpack.c.b16 %v681, %v680
    %v806 = vpack.c.b16 %v683, %v682
    %v807 = vpack.c.b16 %v685, %v684
    %v808 = vpack.c.b16 %v687, %v686
    %v809 = vpack.c.b16 %v689, %v688
    %v810 = vpack.c.b16 %v691, %v690
    %v811 = vpack.c.b16 %v693, %v692
    %v812 = vpack.c.b16 %v695, %v694
    %v813 = vpack.c.b16 %v697, %v696
    %v814 = vpack.c.b16 %v699, %v698
    %v815 = vpack.c.b16 %v701, %v700
    %v816 = vpack.c.b16 %v703, %v702
    %v817 = vpack.c.b16 %v705, %v704
    %v818 = vpack.c.b16 %v707, %v706
    %v819 = vpack.c.b16 %v709, %v708
    %v820 = vpack.c.b16 %v711, %v710
    %v821 = vpack.c.b16 %v713, %v712
    %v822 = vpack.c.b16 %v715, %v714
    %v823 = vpack.c.b16 %v717, %v716
    %v824 = vpack.c.b16 %v719, %v718
    %v825 = vpack.c.b16 %v721, %v720
    %v826 = vpack.c.b16 %v723, %v722
    %v827 = vpack.c.b16 %v725, %v724
    %v828 = vpack.c.b16 %v727, %v726
    %v829 = vpack.c.b16 %v729, %v728
    %v830 = vpack.c.b16 %v731, %v730
    %v831 = vpack.c.b16 %v733, %v732
    %v832 = vpack.c.b16 %v735, %v734
    %v833 = vpack.c.b16 %v737, %v736
    %930 = vmatprep.subr.bf16.mxu0 0
    %931 = vmatpush1.bf16.msra.mxu0 %v738
    %932 = vmatprep.subr.bf16.mxu0 0
    %933 = vmatpush1.bf16.msra.mxu0 %v739
    %934 = vmatprep.subr.bf16.mxu0 0
    %935 = vmatpush1.bf16.msra.mxu0 %v740
    %936 = vmatprep.subr.bf16.mxu0 0
    %937 = vmatpush1.bf16.msra.mxu0 %v741
    %938 = vmatprep.subr.bf16.mxu0 0
    %939 = vmatpush1.bf16.msra.mxu0 %v742
    %940 = vmatprep.subr.bf16.mxu0 0
    %941 = vmatpush1.bf16.msra.mxu0 %v743
    %942 = vmatprep.subr.bf16.mxu0 0
    %943 = vmatpush1.bf16.msra.mxu0 %v744
    %944 = vmatprep.subr.bf16.mxu0 0
    %945 = vmatpush1.bf16.msra.mxu0 %v745
    %946 = vmatprep.subr.bf16.mxu0 0
    %947 = vmatpush1.bf16.msra.mxu0 %v746
    %948 = vmatprep.subr.bf16.mxu0 0
    %949 = vmatpush1.bf16.msra.mxu0 %v747
    %950 = vmatprep.subr.bf16.mxu0 0
    %951 = vmatpush1.bf16.msra.mxu0 %v748
    %952 = vmatprep.subr.bf16.mxu0 0
    %953 = vmatpush1.bf16.msra.mxu0 %v749
    %954 = vmatprep.subr.bf16.mxu0 0
    %955 = vmatpush1.bf16.msra.mxu0 %v750
    %956 = vmatprep.subr.bf16.mxu0 0
    %957 = vmatpush1.bf16.msra.mxu0 %v751
    %958 = vmatprep.subr.bf16.mxu0 0
    %959 = vmatpush1.bf16.msra.mxu0 %v752
    %960 = vmatprep.subr.bf16.mxu0 0
    %961 = vmatpush1.bf16.msra.mxu0 %v753
    %962 = vmatprep.mubr.bf16.mxu0 %v331
    %963 = vmatmul.mubr.bf16.gmra.mrb[0].mxu0 %v330
    %v964 = vpop.f32.mrb[0].mxu0
    %v965 = vadd.f32 %v292, %v964
    %v966 = vpop.f32.mrb[0].mxu0
    %v967 = vpop.f32.mrb[0].mxu0
    %v968 = vadd.f32 %v292, %v967
    %v969 = vpop.f32.mrb[0].mxu0
    %970 = vdwg.mxu0
    %971 = vmatprep.subr.bf16.mxu0 0
    %972 = vmatpush1.bf16.msra.mxu0 %v754
    %973 = vmatprep.subr.bf16.mxu0 0
    %974 = vmatpush1.bf16.msra.mxu0 %v755
    %975 = vmatprep.subr.bf16.mxu0 0
    %976 = vmatpush1.bf16.msra.mxu0 %v756
    %977 = vmatprep.subr.bf16.mxu0 0
    %978 = vmatpush1.bf16.msra.mxu0 %v757
    %979 = vmatprep.subr.bf16.mxu0 0
    %980 = vmatpush1.bf16.msra.mxu0 %v758
    %981 = vmatprep.subr.bf16.mxu0 0
    %982 = vmatpush1.bf16.msra.mxu0 %v759
    %983 = vmatprep.subr.bf16.mxu0 0
    %984 = vmatpush1.bf16.msra.mxu0 %v760
    %985 = vmatprep.subr.bf16.mxu0 0
    %986 = vmatpush1.bf16.msra.mxu0 %v761
    %987 = vmatprep.subr.bf16.mxu0 0
    %988 = vmatpush1.bf16.msra.mxu0 %v762
    %989 = vmatprep.subr.bf16.mxu0 0
    %990 = vmatpush1.bf16.msra.mxu0 %v763
    %991 = vmatprep.subr.bf16.mxu0 0
    %992 = vmatpush1.bf16.msra.mxu0 %v764
    %993 = vmatprep.subr.bf16.mxu0 0
    %994 = vmatpush1.bf16.msra.mxu0 %v765
    %995 = vmatprep.subr.bf16.mxu0 0
    %996 = vmatpush1.bf16.msra.mxu0 %v766
    %997 = vmatprep.subr.bf16.mxu0 0
    %998 = vmatpush1.bf16.msra.mxu0 %v767
    %999 = vmatprep.subr.bf16.mxu0 0
    %1000 = vmatpush1.bf16.msra.mxu0 %v768
    %1001 = vmatprep.subr.bf16.mxu0 0
    %1002 = vmatpush1.bf16.msra.mxu0 %v769
    %1003 = vmatprep.mubr.bf16.mxu0 %v333
    %1004 = vmatmul.mubr.bf16.gmra.mrb[0].mxu0 %v332
    %v1005 = vpop.f32.mrb[0].mxu0
    %v1006 = vadd.f32 %v965, %v1005
    %v1007 = vpop.f32.mrb[0].mxu0
    %v1008 = vpop.f32.mrb[0].mxu0
    %v1009 = vadd.f32 %v968, %v1008
    %v1010 = vpop.f32.mrb[0].mxu0
    %1011 = vdwg.mxu0
    %1012 = vmatprep.subr.bf16.mxu0 0
    %1013 = vmatpush1.bf16.msra.mxu0 %v770
    %1014 = vmatprep.subr.bf16.mxu0 0
    %1015 = vmatpush1.bf16.msra.mxu0 %v771
    %1016 = vmatprep.subr.bf16.mxu0 0
    %1017 = vmatpush1.bf16.msra.mxu0 %v772
    %1018 = vmatprep.subr.bf16.mxu0 0
    %1019 = vmatpush1.bf16.msra.mxu0 %v773
    %1020 = vmatprep.subr.bf16.mxu0 0
    %1021 = vmatpush1.bf16.msra.mxu0 %v774
    %1022 = vmatprep.subr.bf16.mxu0 0
    %1023 = vmatpush1.bf16.msra.mxu0 %v775
    %1024 = vmatprep.subr.bf16.mxu0 0
    %1025 = vmatpush1.bf16.msra.mxu0 %v776
    %1026 = vmatprep.subr.bf16.mxu0 0
    %1027 = vmatpush1.bf16.msra.mxu0 %v777
    %1028 = vmatprep.subr.bf16.mxu0 0
    %1029 = vmatpush1.bf16.msra.mxu0 %v778
    %1030 = vmatprep.subr.bf16.mxu0 0
    %1031 = vmatpush1.bf16.msra.mxu0 %v779
    %1032 = vmatprep.subr.bf16.mxu0 0
    %1033 = vmatpush1.bf16.msra.mxu0 %v780
    %1034 = vmatprep.subr.bf16.mxu0 0
    %1035 = vmatpush1.bf16.msra.mxu0 %v781
    %1036 = vmatprep.subr.bf16.mxu0 0
    %1037 = vmatpush1.bf16.msra.mxu0 %v782
    %1038 = vmatprep.subr.bf16.mxu0 0
    %1039 = vmatpush1.bf16.msra.mxu0 %v783
    %1040 = vmatprep.subr.bf16.mxu0 0
    %1041 = vmatpush1.bf16.msra.mxu0 %v784
    %1042 = vmatprep.subr.bf16.mxu0 0
    %1043 = vmatpush1.bf16.msra.mxu0 %v785
    %1044 = vmatprep.mubr.bf16.mxu0 %v335
    %1045 = vmatmul.mubr.bf16.gmra.mrb[0].mxu0 %v334
    %v1046 = vpop.f32.mrb[0].mxu0
    %v1047 = vadd.f32 %v1006, %v1046
    %v1048 = vpop.f32.mrb[0].mxu0
    %v1049 = vpop.f32.mrb[0].mxu0
    %v1050 = vadd.f32 %v1009, %v1049
    %v1051 = vpop.f32.mrb[0].mxu0
    %1052 = vdwg.mxu0
    %1053 = vmatprep.subr.bf16.mxu0 0
    %1054 = vmatpush1.bf16.msra.mxu0 %v786
    %1055 = vmatprep.subr.bf16.mxu0 0
    %1056 = vmatpush1.bf16.msra.mxu0 %v787
    %1057 = vmatprep.subr.bf16.mxu0 0
    %1058 = vmatpush1.bf16.msra.mxu0 %v788
    %1059 = vmatprep.subr.bf16.mxu0 0
    %1060 = vmatpush1.bf16.msra.mxu0 %v789
    %1061 = vmatprep.subr.bf16.mxu0 0
    %1062 = vmatpush1.bf16.msra.mxu0 %v790
    %1063 = vmatprep.subr.bf16.mxu0 0
    %1064 = vmatpush1.bf16.msra.mxu0 %v791
    %1065 = vmatprep.subr.bf16.mxu0 0
    %1066 = vmatpush1.bf16.msra.mxu0 %v792
    %1067 = vmatprep.subr.bf16.mxu0 0
    %1068 = vmatpush1.bf16.msra.mxu0 %v793
    %1069 = vmatprep.subr.bf16.mxu0 0
    %1070 = vmatpush1.bf16.msra.mxu0 %v794
    %1071 = vmatprep.subr.bf16.mxu0 0
    %1072 = vmatpush1.bf16.msra.mxu0 %v795
    %1073 = vmatprep.subr.bf16.mxu0 0
    %1074 = vmatpush1.bf16.msra.mxu0 %v796
    %1075 = vmatprep.subr.bf16.mxu0 0
    %1076 = vmatpush1.bf16.msra.mxu0 %v797
    %1077 = vmatprep.subr.bf16.mxu0 0
    %1078 = vmatpush1.bf16.msra.mxu0 %v798
    %1079 = vmatprep.subr.bf16.mxu0 0
    %1080 = vmatpush1.bf16.msra.mxu0 %v799
    %1081 = vmatprep.subr.bf16.mxu0 0
    %1082 = vmatpush1.bf16.msra.mxu0 %v800
    %1083 = vmatprep.subr.bf16.mxu0 0
    %1084 = vmatpush1.bf16.msra.mxu0 %v801
    %1085 = vmatprep.mubr.bf16.mxu0 %v337
    %1086 = vmatmul.mubr.bf16.gmra.mrb[0].mxu0 %v336
    %v1087 = vpop.f32.mrb[0].mxu0
    %v1088 = vadd.f32 %v1047, %v1087
    %v1089 = vpop.f32.mrb[0].mxu0
    %v1090 = vpop.f32.mrb[0].mxu0
    %v1091 = vadd.f32 %v1050, %v1090
    %v1092 = vpop.f32.mrb[0].mxu0
    %1093 = vdwg.mxu0
    %1094 = vmatprep.subr.bf16.mxu0 0
    %1095 = vmatpush1.bf16.msra.mxu0 %v802
    %1096 = vmatprep.subr.bf16.mxu0 0
    %1097 = vmatpush1.bf16.msra.mxu0 %v803
    %1098 = vmatprep.subr.bf16.mxu0 0
    %1099 = vmatpush1.bf16.msra.mxu0 %v804
    %1100 = vmatprep.subr.bf16.mxu0 0
    %1101 = vmatpush1.bf16.msra.mxu0 %v805
    %1102 = vmatprep.subr.bf16.mxu0 0
    %1103 = vmatpush1.bf16.msra.mxu0 %v806
    %1104 = vmatprep.subr.bf16.mxu0 0
    %1105 = vmatpush1.bf16.msra.mxu0 %v807
    %1106 = vmatprep.subr.bf16.mxu0 0
    %1107 = vmatpush1.bf16.msra.mxu0 %v808
    %1108 = vmatprep.subr.bf16.mxu0 0
    %1109 = vmatpush1.bf16.msra.mxu0 %v809
    %1110 = vmatprep.subr.bf16.mxu0 0
    %1111 = vmatpush1.bf16.msra.mxu0 %v810
    %1112 = vmatprep.subr.bf16.mxu0 0
    %1113 = vmatpush1.bf16.msra.mxu0 %v811
    %1114 = vmatprep.subr.bf16.mxu0 0
    %1115 = vmatpush1.bf16.msra.mxu0 %v812
    %1116 = vmatprep.subr.bf16.mxu0 0
    %1117 = vmatpush1.bf16.msra.mxu0 %v813
    %1118 = vmatprep.subr.bf16.mxu0 0
    %1119 = vmatpush1.bf16.msra.mxu0 %v814
    %1120 = vmatprep.subr.bf16.mxu0 0
    %1121 = vmatpush1.bf16.msra.mxu0 %v815
    %1122 = vmatprep.subr.bf16.mxu0 0
    %1123 = vmatpush1.bf16.msra.mxu0 %v816
    %1124 = vmatprep.subr.bf16.mxu0 0
    %1125 = vmatpush1.bf16.msra.mxu0 %v817
    %1126 = vmatprep.mubr.bf16.mxu0 %v339
    %1127 = vmatmul.mubr.bf16.gmra.mrb[0].mxu0 %v338
    %v1128 = vpop.f32.mrb[0].mxu0
    %v1129 = vadd.f32 %v1088, %v1128
    %v1130 = vpop.f32.mrb[0].mxu0
    %v1131 = vpop.f32.mrb[0].mxu0
    %v1132 = vadd.f32 %v1091, %v1131
    %v1133 = vpop.f32.mrb[0].mxu0
    %1134 = vdwg.mxu0
    %1135 = vmatprep.subr.bf16.mxu0 0
    %1136 = vmatpush1.bf16.msra.mxu0 %v818
    %1137 = vmatprep.subr.bf16.mxu0 0
    %1138 = vmatpush1.bf16.msra.mxu0 %v819
    %1139 = vmatprep.subr.bf16.mxu0 0
    %1140 = vmatpush1.bf16.msra.mxu0 %v820
    %1141 = vmatprep.subr.bf16.mxu0 0
    %1142 = vmatpush1.bf16.msra.mxu0 %v821
    %1143 = vmatprep.subr.bf16.mxu0 0
    %1144 = vmatpush1.bf16.msra.mxu0 %v822
    %1145 = vmatprep.subr.bf16.mxu0 0
    %1146 = vmatpush1.bf16.msra.mxu0 %v823
    %1147 = vmatprep.subr.bf16.mxu0 0
    %1148 = vmatpush1.bf16.msra.mxu0 %v824
    %1149 = vmatprep.subr.bf16.mxu0 0
    %1150 = vmatpush1.bf16.msra.mxu0 %v825
    %1151 = vmatprep.subr.bf16.mxu0 0
    %1152 = vmatpush1.bf16.msra.mxu0 %v826
    %1153 = vmatprep.subr.bf16.mxu0 0
    %1154 = vmatpush1.bf16.msra.mxu0 %v827
    %1155 = vmatprep.subr.bf16.mxu0 0
    %1156 = vmatpush1.bf16.msra.mxu0 %v828
    %1157 = vmatprep.subr.bf16.mxu0 0
    %1158 = vmatpush1.bf16.msra.mxu0 %v829
    %1159 = vmatprep.subr.bf16.mxu0 0
    %1160 = vmatpush1.bf16.msra.mxu0 %v830
    %1161 = vmatprep.subr.bf16.mxu0 0
    %1162 = vmatpush1.bf16.msra.mxu0 %v831
    %1163 = vmatprep.subr.bf16.mxu0 0
    %1164 = vmatpush1.bf16.msra.mxu0 %v832
    %1165 = vmatprep.subr.bf16.mxu0 0
    %1166 = vmatpush1.bf16.msra.mxu0 %v833
    %1167 = vmatprep.mubr.bf16.mxu0 %v341
    %1168 = vmatmul.mubr.bf16.gmra.mrb[0].mxu0 %v340
    %v1169 = vpop.f32.mrb[0].mxu0
    %v1170 = vadd.f32 %v1129, %v1169
    %v1171 = vpop.f32.mrb[0].mxu0
    %v1172 = vpop.f32.mrb[0].mxu0
    %v1173 = vadd.f32 %v1132, %v1172
    %v1174 = vpop.f32.mrb[0].mxu0
    %1175 = vdwg.mxu0
    %v1176 = vmax.f32 %v1170, 0.0
    %v1177 = vmax.f32 %v1173, 0.0
    %v1178 = vpack.c.bf16 %v1177, %v1176
    %v1179 = vld [vmem:[#allocation7] sm:$0xf]
    %v1180 = vld [vmem:[#allocation7 + $0x4] sm:$0xf]
    %v1181 = vld [vmem:[#allocation7 + $0x8] sm:$0xf]
    %v1182 = vld [vmem:[#allocation7 + $0xc] sm:$0xf]
    %v1183 = vld [vmem:[#allocation7 + $0x10] sm:$0xf]
    %v1184 = vld [vmem:[#allocation7 + $0x14] sm:$0xf]
    %v1185 = vld [vmem:[#allocation7 + $0x18] sm:$0xf]
    %v1186 = vld [vmem:[#allocation7 + $0x1c] sm:$0xf]
    %v1187 = vld [vmem:[#allocation7 + $0x20] sm:$0xf]
    %v1188 = vld [vmem:[#allocation7 + $0x24] sm:$0xf]
    %v1189 = vld [vmem:[#allocation7 + $0x28] sm:$0xf]
    %v1190 = vld [vmem:[#allocation7 + $0x2c] sm:$0xf]
    %v1191 = vld [vmem:[#allocation7 + $0x30] sm:$0xf]
    %v1192 = vld [vmem:[#allocation7 + $0x34] sm:$0xf]
    %v1193 = vld [vmem:[#allocation7 + $0x38] sm:$0xf]
    %v1194 = vld [vmem:[#allocation7 + $0x3c] sm:$0xf]
    %v1195 = vld [vmem:[%s4] sm:$0x1]
    %v1197 = vlaneseq
    %v1198 = vshrl.u32 %v1197, 7
    %v1199 = vsub.s32 0, %v1198
    %v1200 = vrot.slane %v1195, %v1199
    %v1218 = vunpack.c.l.b16 %v1179
    %v1219 = vunpack.c.l.b16 %v1180
    %v1220 = vunpack.c.l.b16 %v1181
    %v1221 = vunpack.c.l.b16 %v1182
    %v1222 = vunpack.c.l.b16 %v1183
    %v1223 = vunpack.c.l.b16 %v1184
    %v1224 = vunpack.c.l.b16 %v1185
    %v1225 = vunpack.c.l.b16 %v1186
    %v1226 = vunpack.c.l.b16 %v1187
    %v1227 = vunpack.c.l.b16 %v1188
    %v1228 = vunpack.c.l.b16 %v1189
    %v1229 = vunpack.c.l.b16 %v1190
    %v1230 = vunpack.c.l.b16 %v1191
    %v1231 = vunpack.c.l.b16 %v1192
    %v1232 = vunpack.c.l.b16 %v1193
    %v1233 = vunpack.c.l.b16 %v1194
    %v1234 = vpack.c.b16 %v1219, %v1218
    %v1235 = vpack.c.b16 %v1221, %v1220
    %v1236 = vpack.c.b16 %v1223, %v1222
    %v1237 = vpack.c.b16 %v1225, %v1224
    %v1238 = vpack.c.b16 %v1227, %v1226
    %v1239 = vpack.c.b16 %v1229, %v1228
    %v1240 = vpack.c.b16 %v1231, %v1230
    %v1241 = vpack.c.b16 %v1233, %v1232
    %1250 = vmatprep.subr.bf16.mxu0 0
    %1251 = vmatpush1.bf16.msra.mxu0 %v1234
    %1252 = vmatprep.subr.bf16.mxu0 0
    %1253 = vmatpush1.bf16.msra.mxu0 %v1235
    %1254 = vmatprep.subr.bf16.mxu0 0
    %1255 = vmatpush1.bf16.msra.mxu0 %v1236
    %1256 = vmatprep.subr.bf16.mxu0 0
    %1257 = vmatpush1.bf16.msra.mxu0 %v1237
    %1258 = vmatprep.subr.bf16.mxu0 0
    %1259 = vmatpush1.bf16.msra.mxu0 %v1238
    %1260 = vmatprep.subr.bf16.mxu0 0
    %1261 = vmatpush1.bf16.msra.mxu0 %v1239
    %1262 = vmatprep.subr.bf16.mxu0 0
    %1263 = vmatpush1.bf16.msra.mxu0 %v1240
    %1264 = vmatprep.subr.bf16.mxu0 0
    %1265 = vmatpush1.bf16.msra.mxu0 %v1241
    %1266 = vmatprep.subr.bf16.mxu0 0
    %1267 = vmatpush1.bf16.msra.mxu0 0
    %1268 = vmatprep.subr.bf16.mxu0 0
    %1269 = vmatpush1.bf16.msra.mxu0 0
    %1270 = vmatprep.subr.bf16.mxu0 0
    %1271 = vmatpush1.bf16.msra.mxu0 0
    %1272 = vmatprep.subr.bf16.mxu0 0
    %1273 = vmatpush1.bf16.msra.mxu0 0
    %1274 = vmatprep.subr.bf16.mxu0 0
    %1275 = vmatpush1.bf16.msra.mxu0 0
    %1276 = vmatprep.subr.bf16.mxu0 0
    %1277 = vmatpush1.bf16.msra.mxu0 0
    %1278 = vmatprep.subr.bf16.mxu0 0
    %1279 = vmatpush1.bf16.msra.mxu0 0
    %1280 = vmatprep.subr.bf16.mxu0 0
    %1281 = vmatpush1.bf16.msra.mxu0 0
    %1282 = vmatprep.mubr.bf16.mxu0 0
    %1283 = vmatmul.mubr.bf16.gmra.mrb[0].mxu0 %v1178
    %v1284 = vpop.f32.mrb[0].mxu0
    %v1285 = vadd.f32 %v1200, %v1284
    %v1286 = vpop.f32.mrb[0].mxu0
    %v1287 = vpop.f32.mrb[0].mxu0
    %v1288 = vadd.f32 %v1200, %v1287
    %v1289 = vpop.f32.mrb[0].mxu0
    %1290 = vdwg.mxu0
    %v1291 = vmax.f32 %v1285, 0.0
    %v1292 = vmax.f32 %v1288, 0.0
    %v1293 = vpack.c.bf16 %v1292, %v1291
    %v1294 = vld [vmem:[#allocation8] sm:$0xf]
    %v1295 = vld [vmem:[#allocation8 + $0x4] sm:$0xf]
    %v1296 = vld [vmem:[#allocation8 + $0x8] sm:$0xf]
    %v1297 = vld [vmem:[#allocation8 + $0xc] sm:$0xf]
    %v1298 = vld [vmem:[#allocation8 + $0x10] sm:$0xf]
    %v1299 = vld [vmem:[#allocation8 + $0x14] sm:$0xf]
    %v1300 = vld [vmem:[#allocation8 + $0x18] sm:$0xf]
    %v1301 = vld [vmem:[#allocation8 + $0x1c] sm:$0xf]
    %v1302 = vld [vmem:[#allocation8 + $0x20] sm:$0xf]
    %v1303 = vld [vmem:[#allocation8 + $0x24] sm:$0xf]
    %v1304 = vld [vmem:[#allocation8 + $0x28] sm:$0xf]
    %v1305 = vld [vmem:[#allocation8 + $0x2c] sm:$0xf]
    %v1306 = vld [vmem:[#allocation8 + $0x30] sm:$0xf]
    %v1307 = vld [vmem:[#allocation8 + $0x34] sm:$0xf]
    %v1308 = vld [vmem:[#allocation8 + $0x38] sm:$0xf]
    %v1309 = vld [vmem:[#allocation8 + $0x3c] sm:$0xf]
    %v1310 = vld [vmem:[%s6] sm:$0x1]
    %v1312 = vlaneseq
    %v1313 = vshrl.u32 %v1312, 7
    %v1314 = vsub.s32 0, %v1313
    %v1315 = vrot.slane %v1310, %v1314
    %v1333 = vunpack.c.l.b16 %v1294
    %v1334 = vunpack.c.l.b16 %v1295
    %v1335 = vunpack.c.l.b16 %v1296
    %v1336 = vunpack.c.l.b16 %v1297
    %v1337 = vunpack.c.l.b16 %v1298
    %v1338 = vunpack.c.l.b16 %v1299
    %v1339 = vunpack.c.l.b16 %v1300
    %v1340 = vunpack.c.l.b16 %v1301
    %v1341 = vunpack.c.l.b16 %v1302
    %v1342 = vunpack.c.l.b16 %v1303
    %v1343 = vunpack.c.l.b16 %v1304
    %v1344 = vunpack.c.l.b16 %v1305
    %v1345 = vunpack.c.l.b16 %v1306
    %v1346 = vunpack.c.l.b16 %v1307
    %v1347 = vunpack.c.l.b16 %v1308
    %v1348 = vunpack.c.l.b16 %v1309
    %v1349 = vpack.c.b16 %v1334, %v1333
    %v1350 = vpack.c.b16 %v1336, %v1335
    %v1351 = vpack.c.b16 %v1338, %v1337
    %v1352 = vpack.c.b16 %v1340, %v1339
    %v1353 = vpack.c.b16 %v1342, %v1341
    %v1354 = vpack.c.b16 %v1344, %v1343
    %v1355 = vpack.c.b16 %v1346, %v1345
    %v1356 = vpack.c.b16 %v1348, %v1347
    %1365 = vmatprep.subr.bf16.mxu0 0
    %1366 = vmatpush1.bf16.msra.mxu0 %v1349
    %1367 = vmatprep.subr.bf16.mxu0 0
    %1368 = vmatpush1.bf16.msra.mxu0 %v1350
    %1369 = vmatprep.subr.bf16.mxu0 0
    %1370 = vmatpush1.bf16.msra.mxu0 %v1351
    %1371 = vmatprep.subr.bf16.mxu0 0
    %1372 = vmatpush1.bf16.msra.mxu0 %v1352
    %1373 = vmatprep.subr.bf16.mxu0 0
    %1374 = vmatpush1.bf16.msra.mxu0 %v1353
    %1375 = vmatprep.subr.bf16.mxu0 0
    %1376 = vmatpush1.bf16.msra.mxu0 %v1354
    %1377 = vmatprep.subr.bf16.mxu0 0
    %1378 = vmatpush1.bf16.msra.mxu0 %v1355
    %1379 = vmatprep.subr.bf16.mxu0 0
    %1380 = vmatpush1.bf16.msra.mxu0 %v1356
    %1381 = vmatprep.subr.bf16.mxu0 0
    %1382 = vmatpush1.bf16.msra.mxu0 0
    %1383 = vmatprep.subr.bf16.mxu0 0
    %1384 = vmatpush1.bf16.msra.mxu0 0
    %1385 = vmatprep.subr.bf16.mxu0 0
    %1386 = vmatpush1.bf16.msra.mxu0 0
    %1387 = vmatprep.subr.bf16.mxu0 0
    %1388 = vmatpush1.bf16.msra.mxu0 0
    %1389 = vmatprep.subr.bf16.mxu0 0
    %1390 = vmatpush1.bf16.msra.mxu0 0
    %1391 = vmatprep.subr.bf16.mxu0 0
    %1392 = vmatpush1.bf16.msra.mxu0 0
    %1393 = vmatprep.subr.bf16.mxu0 0
    %1394 = vmatpush1.bf16.msra.mxu0 0
    %1395 = vmatprep.subr.bf16.mxu0 0
    %1396 = vmatpush1.bf16.msra.mxu0 0
    %1397 = vmatprep.mubr.bf16.mxu0 0
    %1398 = vmatmul.mubr.bf16.gmra.mrb[0].mxu0 %v1293
    %v1399 = vpop.f32.mrb[0].mxu0
    %v1400 = vadd.f32 %v1315, %v1399
    %v1401 = vpop.f32.mrb[0].mxu0
    %v1402 = vpop.f32.mrb[0].mxu0
    %v1403 = vadd.f32 %v1315, %v1402
    %v1404 = vpop.f32.mrb[0].mxu0
    %1405 = vdwg.mxu0
    %1406 = vst [vmem:[#allocation10] sm:$0xff] %v1400
    %1407 = vst [vmem:[#allocation10 + $0x8] sm:$0xff] %v1403
    // Predicated region
    $region46: #{tpu_custom_call.1} parent=1 // pred_check
      _
    $region47: #{tpu_custom_call.1} parent=1 // pred_check_branch
      %1409 = sbr.rel (0) target = $region49
    $region48: #{tpu_custom_call.1} parent=1 // pred_region
      %s1411 = ssub.s32 256, 256
      %1412 = vsyncadd [#allocation4], %s1411
      %s1413 = sshll.u32 [#allocation10], 4
      %s1414 = int_to_ptr.vmem [resolvable:$true] %s1413
      %1419 = dma.vmem_to_hbm [thread:$0]  %s1414, 256, %s7, [#allocation4], 128, 128, 8
    $region49: #{tpu_custom_call.1} parent=1 // pred_fallthru
      _
    // Predicated region
    $region50: #{tpu_custom_call.1} parent=1 // pred_check
      _
    $region51: #{tpu_custom_call.1} parent=1 // pred_check_branch
      %1421 = sbr.rel (0) target = $region53
    $region52: #{tpu_custom_call.1} parent=1 // pred_region
      %1422 = dma.done [#allocation4], 256
    $region53: #{tpu_custom_call.1} parent=1 // pred_fallthru
      _
    %1423 = vsyncpa [#allocation3], 1
    %1424 = vsyncpa [#allocation6], 1
    %1425 = vsyncpa [#allocation9], 1
    %1426 = vsyncpa [#allocation4], 1

</llo_original>
